<compile_context>
chip_gen: v5e
topology: v5e:2x2
jax: 0.10.0
libtpu: 0.0.40
codegen_flags: <defaults>
</compile_context>

<pallas_src>
import jax
import jax.numpy as jnp
from jax.experimental import pallas as pl
from jax.experimental.pallas import tpu as pltpu


# ----------------------------------------------------------------------------
# Kernel: fused 4-layer MLP ((Linear + ReLU) x 3, final Linear, no activation)
# ----------------------------------------------------------------------------
def _make_decoder_kernel(act_dtype):
    """act_dtype: dtype for inter-layer bias-add / ReLU (bf16 on v6e/v7x,
    f32 on v5e whose VPU has no native bf16)."""

    def kernel(x_ref,
               w1_ref, b1_ref, w2_ref, b2_ref,
               w3_ref, b3_ref, w4_ref, b4_ref,
               out_ref):
        def hidden(h, w_ref, b_ref):
            # MXU dot in the weights' dtype (bf16), f32 accumulation.
            acc = jnp.dot(h.astype(w_ref.dtype), w_ref[...],
                          preferred_element_type=jnp.float32)
            h = acc.astype(act_dtype) + b_ref[...]      # bias stored in act_dtype
            return jnp.maximum(h, 0)                    # ReLU in act_dtype

        h = hidden(x_ref[...], w1_ref, b1_ref)          # x cast in-kernel, not in XLA
        h = hidden(h, w2_ref, b2_ref)
        h = hidden(h, w3_ref, b3_ref)
        acc = jnp.dot(h.astype(w4_ref.dtype), w4_ref[...],
                      preferred_element_type=jnp.float32)
        out_ref[...] = (acc + b4_ref[...]).astype(out_ref.dtype)  # last bias in f32

    return kernel


# ----------------------------------------------------------------------------
# Helpers
# ----------------------------------------------------------------------------
def _round_up(n, m):
    return ((n + m - 1) // m) * m


def _device_kind():
    try:
        return jax.devices()[0].device_kind.lower()
    except Exception:       # no accelerator info available; use safe defaults
        return ""


def _tensorcores_per_chip():
    return 2 if "v7" in _device_kind() else 1


def _default_act_dtype():
    # bf16 elementwise only on bf16-native VPUs (v6e / v7x); f32 elsewhere.
    kind = _device_kind()
    if "v6" in kind or "v7" in kind:
        return jnp.bfloat16
    return jnp.float32


def _choose_tiling(batch, *, tb_min=256, tb_max=1024, target_steps=8):
    """Pick a row tile `tb` (multiple of 8, in [tb_min, tb_max]) and a padded
    batch (multiple of tb).

    Targets >= `target_steps` grid iterations so the BlockSpec software
    pipeline has real work to overlap and the ~0.35us/step overhead is
    amortised, while keeping tb in the measured 256..1024-row HBM-roofline
    sweet spot.  The step count is rounded up to a multiple of the TensorCore
    count so v7x's two cores stay balanced (no-op on v5e/v6e).

    VMEM: at tb <= 1024 the live set (double-buffered f32 out tile ~2 MiB +
    x + bf16 weights + intermediates) is under ~4 MiB, comfortably inside even
    v5e's ~16 MiB scoped-VMEM default and v7x's 64 MiB physical VMEM.  If tb
    is ever pushed past ~2048, pass vmem_limit_bytes explicitly.
    """
    if batch <= tb_min:
        return _round_up(batch, 8), _round_up(batch, 8)   # one step; tiny problem
    tb = _round_up(-(-batch // target_steps), 8)
    tb = max(tb_min, min(tb, tb_max))
    steps = -(-batch // tb)
    tc = _tensorcores_per_chip()
    if steps % tc:
        steps += tc - steps % tc
    return tb, steps * tb


def prepare_params(params, *, weight_dtype=jnp.bfloat16, act_dtype=None):
    """Pad hidden feature dims to 128 lanes and cast ONCE (reuse across calls).

    params = [(W1,b1),...,(W4,b4)] with Wi (in,out) (= PyTorch weight.T) and
    bi (out,) or (1,out).  Padding is mathematically exact.  Returns a flat
    tuple (w1,b1,...,w4,b4): weights in weight_dtype, hidden biases in
    act_dtype, final bias in f32.
    """
    if act_dtype is None:
        act_dtype = _default_act_dtype()
    n = len(params)
    flat = []
    for i, (w, b) in enumerate(params):
        w = jnp.asarray(w, jnp.float32)
        b = jnp.asarray(b, jnp.float32).reshape(1, -1)
        din, dout = w.shape
        din_p = din if i == 0 else _round_up(din, 128)
        dout_p = dout if i == n - 1 else _round_up(dout, 128)
        if (din_p, dout_p) != (din, dout):
            w = jnp.zeros((din_p, dout_p), w.dtype).at[:din, :dout].set(w)
            b = jnp.zeros((1, dout_p), b.dtype).at[:, :dout].set(b)
        flat.append(w.astype(weight_dtype))
        flat.append(b.astype(jnp.float32 if i == n - 1 else act_dtype))
    return tuple(flat)


# ----------------------------------------------------------------------------
# Wrapper
# ----------------------------------------------------------------------------
def linear_decoder(x, flat_params, *, out_dtype=None, tb=None, target_steps=8):
    """Fused LinearDecoder forward.

    x: (B, bottleneck_dim).
    flat_params: output of prepare_params() (4 linear layers).
    out_dtype: output dtype (default: x.dtype).  Passing jnp.bfloat16 halves
      the dominant HBM traffic (the output tile) in this bandwidth-bound
      kernel (~1.8x on all generations) if downstream tolerates it.
    """
    assert len(flat_params) == 8, "expected 4 (W, b) pairs"
    B, in_feat = x.shape
    out_dim = flat_params[-2].shape[1]
    if out_dtype is None:
        out_dtype = x.dtype
    act_dtype = flat_params[1].dtype            # hidden-bias dtype == elementwise dtype

    if tb is None:
        tb, b_pad = _choose_tiling(B, target_steps=target_steps)
    else:
        tb = _round_up(tb, 8)
        b_pad = _round_up(B, tb)
    if b_pad != B:
        x = jnp.pad(x, ((0, b_pad - B), (0, 0)))        # zero rows, sliced off below

    in_specs = [pl.BlockSpec((tb, in_feat), lambda i: (i, 0))]
    for arr in flat_params:                              # resident weights / biases
        in_specs.append(pl.BlockSpec(arr.shape, lambda i: (0, 0)))

    out = pl.pallas_call(
        _make_decoder_kernel(act_dtype),
        out_shape=jax.ShapeDtypeStruct((b_pad, out_dim), out_dtype),
        grid_spec=pltpu.PrefetchScalarGridSpec(
            num_scalar_prefetch=0,
            grid=(b_pad // tb,),
            in_specs=in_specs,
            out_specs=pl.BlockSpec((tb, out_dim), lambda i: (i, 0)),
        ),
        compiler_params=pltpu.CompilerParams(
            dimension_semantics=("parallel",)),
    )(x, *flat_params)
    return out[:B] if b_pad != B else out


# ----------------------------------------------------------------------------
# Param init + reference
# ----------------------------------------------------------------------------
def init_linear_params(key, in_dim, out_dim):
    """Deterministic PyTorch-style uniform(-1/sqrt(in), 1/sqrt(in)) init."""
    kw, kb = jax.random.split(key)
    bound = 1.0 / jnp.sqrt(jnp.float32(in_dim))
    w = jax.random.uniform(kw, (in_dim, out_dim), jnp.float32, -bound, bound)
    b = jax.random.uniform(kb, (1, out_dim), jnp.float32, -bound, bound)
    return w, b


def reference_forward(x, params, *, dot_dtype=jnp.bfloat16, act_dtype=jnp.float32):
    """Pure-JAX reference emulating the kernel numerics (dot inputs in
    dot_dtype, f32 accumulation, bias/ReLU in act_dtype, f32 final bias)."""
    h = x
    n = len(params)
    for i, (w, b) in enumerate(params):
        acc = jnp.dot(h.astype(dot_dtype), w.astype(dot_dtype),
                      preferred_element_type=jnp.float32)
        b = jnp.asarray(b, jnp.float32).reshape(1, -1)
        if i < n - 1:
            h = jnp.maximum(acc.astype(act_dtype) + b.astype(act_dtype), 0)
        else:
            h = acc + b
    return h


# ----------------------------------------------------------------------------
# Demo / self-test
# ----------------------------------------------------------------------------
if __name__ == "__main__":
    # Small, module-consistent shapes:
    #   bottleneck_dim=32, hidden_dims=[128, 96, 64], input_dim=256
    # Decoder layer chain: 32 -> 64 -> 96 -> 128 -> 256 (ReLU between all but last)
    bottleneck_dim = 32
    hidden_dims = [128, 96, 64]
    input_dim = 256
    batch = 64

    layers = [input_dim] + hidden_dims + [bottleneck_dim]
    # Decoder walks layers from the end back to the front (like the nn.Module).
    layer_dims = [(layers[i], layers[i - 1]) for i in range(len(layers) - 1, 0, -1)]

    key = jax.random.PRNGKey(0)
    key, xkey = jax.random.split(key)
    x = jax.random.normal(xkey, (batch, bottleneck_dim), jnp.float32)

    params = []
    for (din, dout) in layer_dims:
        key, sub = jax.random.split(key)
        params.append(init_linear_params(sub, din, dout))

    flat_params = prepare_params(params)        # pad + cast once, reuse per call
    act_dtype = flat_params[1].dtype

    out = linear_decoder(x, flat_params)
    out = jax.block_until_ready(out)

    ref = reference_forward(x, params, dot_dtype=jnp.bfloat16, act_dtype=act_dtype)
    assert out.shape == (batch, input_dim), out.shape
    assert out.dtype == x.dtype, out.dtype
    assert jnp.allclose(out, ref, atol=2e-2, rtol=2e-2), "mismatch vs reference"

    print("KERNEL_OK")
</pallas_src>

<mosaic_0001>
module attributes {stable_mosaic.version = 11 : i64} {
  func.func @kernel(%arg0: i32, %arg1: memref<64x32xf32, #tpu.memory_space<vmem>>, %arg2: memref<32x128xbf16, #tpu.memory_space<vmem>>, %arg3: memref<1x128xf32, #tpu.memory_space<vmem>>, %arg4: memref<128x128xbf16, #tpu.memory_space<vmem>>, %arg5: memref<1x128xf32, #tpu.memory_space<vmem>>, %arg6: memref<128x128xbf16, #tpu.memory_space<vmem>>, %arg7: memref<1x128xf32, #tpu.memory_space<vmem>>, %arg8: memref<128x256xbf16, #tpu.memory_space<vmem>>, %arg9: memref<1x256xf32, #tpu.memory_space<vmem>>, %arg10: memref<64x256xf32, #tpu.memory_space<vmem>>) attributes {dimension_semantics = [#tpu.dimension_semantics<parallel>], iteration_bounds = array<i64: 1>, scalar_prefetch = 0 : i64, scratch_operands = 0 : i64, tpu.core_type = #tpu.core_type<tc>, window_params = [{transform_indices = @transform_0, window_bounds = array<i64: 64, 32>}, {pipeline_mode = #tpu.pipeline_mode<synchronous>, transform_indices = @transform_1, window_bounds = array<i64: 32, 128>}, {pipeline_mode = #tpu.pipeline_mode<synchronous>, transform_indices = @transform_2, window_bounds = array<i64: 1, 128>}, {pipeline_mode = #tpu.pipeline_mode<synchronous>, transform_indices = @transform_3, window_bounds = array<i64: 128, 128>}, {pipeline_mode = #tpu.pipeline_mode<synchronous>, transform_indices = @transform_4, window_bounds = array<i64: 1, 128>}, {pipeline_mode = #tpu.pipeline_mode<synchronous>, transform_indices = @transform_5, window_bounds = array<i64: 128, 128>}, {pipeline_mode = #tpu.pipeline_mode<synchronous>, transform_indices = @transform_6, window_bounds = array<i64: 1, 128>}, {pipeline_mode = #tpu.pipeline_mode<synchronous>, transform_indices = @transform_7, window_bounds = array<i64: 128, 256>}, {pipeline_mode = #tpu.pipeline_mode<synchronous>, transform_indices = @transform_8, window_bounds = array<i64: 1, 256>}, {transform_indices = @transform_9, window_bounds = array<i64: 64, 256>}]} {
    %c0 = arith.constant 0 : index
    %c0_0 = arith.constant 0 : index
    %0 = vector.load %arg1[%c0, %c0_0] : memref<64x32xf32, #tpu.memory_space<vmem>>, vector<64x32xf32>
    %1 = arith.truncf %0 : vector<64x32xf32> to vector<64x32xbf16>
    %c0_1 = arith.constant 0 : index
    %c0_2 = arith.constant 0 : index
    %2 = vector.load %arg2[%c0_1, %c0_2] : memref<32x128xbf16, #tpu.memory_space<vmem>>, vector<32x128xbf16>
    %cst = arith.constant dense<0.000000e+00> : vector<64x128xf32>
    %3 = tpu.matmul %1, %2, %cst {dimension_numbers = #tpu.dot_dimension_numbers<[1], [0], [0], [1], [0, 0, 1, 1], [], []>} : vector<64x32xbf16>, vector<32x128xbf16>, vector<64x128xf32> -> vector<64x128xf32>
    %c0_3 = arith.constant 0 : index
    %c0_4 = arith.constant 0 : index
    %4 = vector.load %arg3[%c0_3, %c0_4] : memref<1x128xf32, #tpu.memory_space<vmem>>, vector<1x128xf32>
    %5 = vector.broadcast %4 : vector<1x128xf32> to vector<64x128xf32>
    %6 = arith.addf %3, %5 : vector<64x128xf32>
    %cst_5 = arith.constant 0.000000e+00 : f32
    %7 = vector.broadcast %cst_5 : f32 to vector<64x128xf32>
    %8 = arith.maximumf %6, %7 : vector<64x128xf32>
    %9 = arith.truncf %8 : vector<64x128xf32> to vector<64x128xbf16>
    %c0_6 = arith.constant 0 : index
    %c0_7 = arith.constant 0 : index
    %10 = vector.load %arg4[%c0_6, %c0_7] : memref<128x128xbf16, #tpu.memory_space<vmem>>, vector<128x128xbf16>
    %cst_8 = arith.constant dense<0.000000e+00> : vector<64x128xf32>
    %11 = tpu.matmul %9, %10, %cst_8 {dimension_numbers = #tpu.dot_dimension_numbers<[1], [0], [0], [1], [0, 0, 1, 1], [], []>} : vector<64x128xbf16>, vector<128x128xbf16>, vector<64x128xf32> -> vector<64x128xf32>
    %c0_9 = arith.constant 0 : index
    %c0_10 = arith.constant 0 : index
    %12 = vector.load %arg5[%c0_9, %c0_10] : memref<1x128xf32, #tpu.memory_space<vmem>>, vector<1x128xf32>
    %13 = vector.broadcast %12 : vector<1x128xf32> to vector<64x128xf32>
    %14 = arith.addf %11, %13 : vector<64x128xf32>
    %cst_11 = arith.constant 0.000000e+00 : f32
    %15 = vector.broadcast %cst_11 : f32 to vector<64x128xf32>
    %16 = arith.maximumf %14, %15 : vector<64x128xf32>
    %17 = arith.truncf %16 : vector<64x128xf32> to vector<64x128xbf16>
    %c0_12 = arith.constant 0 : index
    %c0_13 = arith.constant 0 : index
    %18 = vector.load %arg6[%c0_12, %c0_13] : memref<128x128xbf16, #tpu.memory_space<vmem>>, vector<128x128xbf16>
    %cst_14 = arith.constant dense<0.000000e+00> : vector<64x128xf32>
    %19 = tpu.matmul %17, %18, %cst_14 {dimension_numbers = #tpu.dot_dimension_numbers<[1], [0], [0], [1], [0, 0, 1, 1], [], []>} : vector<64x128xbf16>, vector<128x128xbf16>, vector<64x128xf32> -> vector<64x128xf32>
    %c0_15 = arith.constant 0 : index
    %c0_16 = arith.constant 0 : index
    %20 = vector.load %arg7[%c0_15, %c0_16] : memref<1x128xf32, #tpu.memory_space<vmem>>, vector<1x128xf32>
    %21 = vector.broadcast %20 : vector<1x128xf32> to vector<64x128xf32>
    %22 = arith.addf %19, %21 : vector<64x128xf32>
    %cst_17 = arith.constant 0.000000e+00 : f32
    %23 = vector.broadcast %cst_17 : f32 to vector<64x128xf32>
    %24 = arith.maximumf %22, %23 : vector<64x128xf32>
    %25 = arith.truncf %24 : vector<64x128xf32> to vector<64x128xbf16>
    %c0_18 = arith.constant 0 : index
    %c0_19 = arith.constant 0 : index
    %26 = vector.load %arg8[%c0_18, %c0_19] : memref<128x256xbf16, #tpu.memory_space<vmem>>, vector<128x256xbf16>
    %cst_20 = arith.constant dense<0.000000e+00> : vector<64x256xf32>
    %27 = tpu.matmul %25, %26, %cst_20 {dimension_numbers = #tpu.dot_dimension_numbers<[1], [0], [0], [1], [0, 0, 1, 1], [], []>} : vector<64x128xbf16>, vector<128x256xbf16>, vector<64x256xf32> -> vector<64x256xf32>
    %c0_21 = arith.constant 0 : index
    %c0_22 = arith.constant 0 : index
    %28 = vector.load %arg9[%c0_21, %c0_22] : memref<1x256xf32, #tpu.memory_space<vmem>>, vector<1x256xf32>
    %29 = vector.broadcast %28 : vector<1x256xf32> to vector<64x256xf32>
    %30 = arith.addf %27, %29 : vector<64x256xf32>
    %c0_23 = arith.constant 0 : index
    %c0_24 = arith.constant 0 : index
    %31 = vector.load %arg10[%c0_23, %c0_24] : memref<64x256xf32, #tpu.memory_space<vmem>>, vector<64x256xf32>
    tpu.vector_store %arg10[%c0_23, %c0_24], %30 {strides = array<i32>} : memref<64x256xf32, #tpu.memory_space<vmem>>, vector<64x256xf32>,
    return
  }
  func.func @transform_0(%arg0: i32) -> (i32, i32) {
    %c0_i32 = arith.constant 0 : i32
    %c0_i32_0 = arith.constant 0 : i32
    return %arg0, %c0_i32 : i32, i32
  }
  func.func @transform_1(%arg0: i32) -> (i32, i32) {
    %c0_i32 = arith.constant 0 : i32
    %c0_i32_0 = arith.constant 0 : i32
    %c0_i32_1 = arith.constant 0 : i32
    return %c0_i32, %c0_i32_0 : i32, i32
  }
  func.func @transform_2(%arg0: i32) -> (i32, i32) {
    %c0_i32 = arith.constant 0 : i32
    %c0_i32_0 = arith.constant 0 : i32
    %c0_i32_1 = arith.constant 0 : i32
    return %c0_i32, %c0_i32_0 : i32, i32
  }
  func.func @transform_3(%arg0: i32) -> (i32, i32) {
    %c0_i32 = arith.constant 0 : i32
    %c0_i32_0 = arith.constant 0 : i32
    %c0_i32_1 = arith.constant 0 : i32
    return %c0_i32, %c0_i32_0 : i32, i32
  }
  func.func @transform_4(%arg0: i32) -> (i32, i32) {
    %c0_i32 = arith.constant 0 : i32
    %c0_i32_0 = arith.constant 0 : i32
    %c0_i32_1 = arith.constant 0 : i32
    return %c0_i32, %c0_i32_0 : i32, i32
  }
  func.func @transform_5(%arg0: i32) -> (i32, i32) {
    %c0_i32 = arith.constant 0 : i32
    %c0_i32_0 = arith.constant 0 : i32
    %c0_i32_1 = arith.constant 0 : i32
    return %c0_i32, %c0_i32_0 : i32, i32
  }
  func.func @transform_6(%arg0: i32) -> (i32, i32) {
    %c0_i32 = arith.constant 0 : i32
    %c0_i32_0 = arith.constant 0 : i32
    %c0_i32_1 = arith.constant 0 : i32
    return %c0_i32, %c0_i32_0 : i32, i32
  }
  func.func @transform_7(%arg0: i32) -> (i32, i32) {
    %c0_i32 = arith.constant 0 : i32
    %c0_i32_0 = arith.constant 0 : i32
    %c0_i32_1 = arith.constant 0 : i32
    return %c0_i32, %c0_i32_0 : i32, i32
  }
  func.func @transform_8(%arg0: i32) -> (i32, i32) {
    %c0_i32 = arith.constant 0 : i32
    %c0_i32_0 = arith.constant 0 : i32
    %c0_i32_1 = arith.constant 0 : i32
    return %c0_i32, %c0_i32_0 : i32, i32
  }
  func.func @transform_9(%arg0: i32) -> (i32, i32) {
    %c0_i32 = arith.constant 0 : i32
    %c0_i32_0 = arith.constant 0 : i32
    return %arg0, %c0_i32 : i32, i32
  }
}

</mosaic_0001>

<llo_original>
// kernel: tpu_custom_call.1
$region0: #{tpu_custom_call.1}
  #allocation0 [shape = 'u32[]', space=smem, size = 0x4, offset = 0x4, fixed_abs, tag = 'smem constant byte address 0x4 - core index']
  #allocation1 [shape = 'u32[72,128]{1,0:T(1,128)}', space=vmem, size = 0x9000, scoped, tag = 'internal scratch']
  %s0 = inlined_call_operand.vmem [shape: f32[64,32], index: 0, kind: input, shape index: {}]
  %s1 = inlined_call_operand.vmem [shape: bf16[32,128], index: 1, kind: input, shape index: {}]
  %s2 = inlined_call_operand.vmem [shape: f32[1,128], index: 2, kind: input, shape index: {}]
  %s3 = inlined_call_operand.vmem [shape: bf16[128,128], index: 3, kind: input, shape index: {}]
  %s4 = inlined_call_operand.vmem [shape: f32[1,128], index: 4, kind: input, shape index: {}]
  %s5 = inlined_call_operand.hbm [shape: bf16[128,128], index: 5, kind: input, shape index: {}]
  %s6 = inlined_call_operand.vmem [shape: f32[1,128], index: 6, kind: input, shape index: {}]
  %s7 = inlined_call_operand.hbm [shape: bf16[128,256], index: 7, kind: input, shape index: {}]
  %s8 = inlined_call_operand.vmem [shape: f32[1,256], index: 8, kind: input, shape index: {}]
  %s9 = inlined_call_operand.hbm [shape: f32[64,256], index: 9, kind: output, shape index: {}]
  %s10 = sld [smem:[#allocation0]]
  $region54: #{tpu_custom_call.1} parent=0
    _
  %s12 = ssub.s32 1, %s10
  %s13 = scalar_select 0, %s12, %s10
  $region1: #{tpu_custom_call.1} parent=0
    #allocation2 [shape = 'u8[32768]{0}', space=vmem, size = 0x8000, scoped, tag = 'input window, operand 5, single buffered']
    #allocation3 [shape = 's32[1]{0}', space=sflag, size = 0x4, scoped, tag = 'scoped memory for tpu_custom_call.1']
    #allocation4 [shape = 's32[1]{0}', space=sflag, size = 0x4, scoped, tag = 'scoped memory for tpu_custom_call.1']
    #allocation5 [shape = 'u8[65536]{0}', space=vmem, size = 0x10000, scoped, tag = 'input window, operand 7, single buffered']
    #allocation6 [shape = 's32[1]{0}', space=sflag, size = 0x4, scoped, tag = 'scoped memory for tpu_custom_call.1']
    #allocation7 [shape = 'u8[65536]{0}', space=vmem, size = 0x10000, scoped, tag = 'output window, operand 0, single buffered']
    %14 = vsyncpa [#allocation3], 0
    %15 = vsyncpa [#allocation6], 0
    %16 = vsyncpa [#allocation4], 0
    // Predicated region
    $region2: #{tpu_custom_call.1} parent=1 // pred_check
      _
    $region3: #{tpu_custom_call.1} parent=1 // pred_check_branch
      %18 = sbr.rel (0) target = $region5
    $region4: #{tpu_custom_call.1} parent=1 // pred_region
      _
    $region5: #{tpu_custom_call.1} parent=1 // pred_fallthru
      _
    // Predicated region
    $region6: #{tpu_custom_call.1} parent=1 // pred_check
      _
    $region7: #{tpu_custom_call.1} parent=1 // pred_check_branch
      %20 = sbr.rel (0) target = $region9
    $region8: #{tpu_custom_call.1} parent=1 // pred_region
      _
    $region9: #{tpu_custom_call.1} parent=1 // pred_fallthru
      _
    // Predicated region
    $region10: #{tpu_custom_call.1} parent=1 // pred_check
      _
    $region11: #{tpu_custom_call.1} parent=1 // pred_check_branch
      %22 = sbr.rel (0) target = $region13
    $region12: #{tpu_custom_call.1} parent=1 // pred_region
      _
    $region13: #{tpu_custom_call.1} parent=1 // pred_fallthru
      _
    // Predicated region
    $region14: #{tpu_custom_call.1} parent=1 // pred_check
      _
    $region15: #{tpu_custom_call.1} parent=1 // pred_check_branch
      %24 = sbr.rel (0) target = $region17
    $region16: #{tpu_custom_call.1} parent=1 // pred_region
      _
    $region17: #{tpu_custom_call.1} parent=1 // pred_fallthru
      _
    // Predicated region
    $region18: #{tpu_custom_call.1} parent=1 // pred_check
      _
    $region19: #{tpu_custom_call.1} parent=1 // pred_check_branch
      %26 = sbr.rel (0) target = $region21
    $region20: #{tpu_custom_call.1} parent=1 // pred_region
      _
    $region21: #{tpu_custom_call.1} parent=1 // pred_fallthru
      _
    // Predicated region
    $region22: #{tpu_custom_call.1} parent=1 // pred_check
      _
    $region23: #{tpu_custom_call.1} parent=1 // pred_check_branch
      %28 = sbr.rel (0) target = $region25
    $region24: #{tpu_custom_call.1} parent=1 // pred_region
      %30 = vsyncadd [#allocation3], 0
      %s31 = sshll.u32 %s5, 4
      %s32 = int_to_ptr.hbm [resolvable:$true] %s31
      %s33 = sshll.u32 [#allocation2], 4
      %s34 = int_to_ptr.vmem [resolvable:$true] %s33
      %39 = dma.hbm_to_vmem [thread:$0]  %s32, 1024, %s34, [#allocation3], 64, 64, 4
    $region25: #{tpu_custom_call.1} parent=1 // pred_fallthru
      _
    // Predicated region
    $region26: #{tpu_custom_call.1} parent=1 // pred_check
      _
    $region27: #{tpu_custom_call.1} parent=1 // pred_check_branch
      %41 = sbr.rel (0) target = $region29
    $region28: #{tpu_custom_call.1} parent=1 // pred_region
      _
    $region29: #{tpu_custom_call.1} parent=1 // pred_fallthru
      _
    // Predicated region
    $region30: #{tpu_custom_call.1} parent=1 // pred_check
      _
    $region31: #{tpu_custom_call.1} parent=1 // pred_check_branch
      %43 = sbr.rel (0) target = $region33
    $region32: #{tpu_custom_call.1} parent=1 // pred_region
      %45 = vsyncadd [#allocation6], 0
      %s46 = sshll.u32 %s7, 4
      %s47 = int_to_ptr.hbm [resolvable:$true] %s46
      %s48 = sshll.u32 [#allocation5], 4
      %s49 = int_to_ptr.vmem [resolvable:$true] %s48
      %54 = dma.hbm_to_vmem [thread:$0]  %s47, 2048, %s49, [#allocation6], 128, 128, 8
    $region33: #{tpu_custom_call.1} parent=1 // pred_fallthru
      _
    // Predicated region
    $region34: #{tpu_custom_call.1} parent=1 // pred_check
      _
    $region35: #{tpu_custom_call.1} parent=1 // pred_check_branch
      %56 = sbr.rel (0) target = $region37
    $region36: #{tpu_custom_call.1} parent=1 // pred_region
      _
    $region37: #{tpu_custom_call.1} parent=1 // pred_fallthru
      _
    // Predicated region
    $region38: #{tpu_custom_call.1} parent=1 // pred_check
      _
    $region39: #{tpu_custom_call.1} parent=1 // pred_check_branch
      %58 = sbr.rel (0) target = $region41
    $region40: #{tpu_custom_call.1} parent=1 // pred_region
      %60 = dma.done [#allocation3], 1024
    $region41: #{tpu_custom_call.1} parent=1 // pred_fallthru
      _
    // Predicated region
    $region42: #{tpu_custom_call.1} parent=1 // pred_check
      _
    $region43: #{tpu_custom_call.1} parent=1 // pred_check_branch
      %62 = sbr.rel (0) target = $region45
    $region44: #{tpu_custom_call.1} parent=1 // pred_region
      %64 = dma.done [#allocation6], 2048
    $region45: #{tpu_custom_call.1} parent=1 // pred_fallthru
      _
    %v66 = vld [vmem:[%s0] sm:$0xff]
    %v67 = vld [vmem:[%s0 + $0x8] sm:$0xff]
    %v68 = vld [vmem:[%s0 + $0x10] sm:$0xff]
    %v69 = vld [vmem:[%s0 + $0x18] sm:$0xff]
    %v70 = vld [vmem:[%s0 + $0x20] sm:$0xff]
    %v71 = vld [vmem:[%s0 + $0x28] sm:$0xff]
    %v72 = vld [vmem:[%s0 + $0x30] sm:$0xff]
    %v73 = vld [vmem:[%s0 + $0x38] sm:$0xff]
    %v74 = vpack.c.bf16 %v67, %v66
    %v75 = vpack.c.bf16 %v69, %v68
    %v76 = vpack.c.bf16 %v71, %v70
    %v77 = vpack.c.bf16 %v73, %v72
    %v78 = vld [vmem:[%s1] sm:$0xf]
    %v79 = vld [vmem:[%s1 + $0x4] sm:$0xf]
    %v80 = vld [vmem:[%s1 + $0x8] sm:$0xf]
    %v81 = vld [vmem:[%s1 + $0xc] sm:$0xf]
    %v82 = vld [vmem:[%s2] sm:$0x1]
    %v84 = vperm.slane %v82, 0
    %v90 = vunpack.c.l.b16 %v78
    %v91 = vunpack.c.l.b16 %v79
    %v92 = vunpack.c.l.b16 %v80
    %v93 = vunpack.c.l.b16 %v81
    %v94 = vpack.c.b16 %v91, %v90
    %v95 = vpack.c.b16 %v93, %v92
    %vm98 = vcmask 261120
    %v100 = vsel %vm98, %v74, 0
    %v103 = vsel %vm98, %v75, 0
    %v106 = vsel %vm98, %v76, 0
    %v109 = vsel %vm98, %v77, 0
    %111 = vmatpush.bf16.msra.mxu0 0
    %112 = vmatpush.bf16.msra.mxu0 0
    %113 = vmatpush.bf16.msra.mxu0 0
    %114 = vmatpush.bf16.msra.mxu0 0
    %115 = vmatpush.bf16.msra.mxu0 0
    %116 = vmatpush.bf16.msra.mxu0 0
    %117 = vmatpush.bf16.msra.mxu0 %v95
    %118 = vmatpush.bf16.msra.mxu0 %v94
    %119 = vmatmul.bf16.gmra.mxu0 %v100
    %v120 = vpop.f32.mrf.mxu0
    %v121 = vadd.f32 %v84, %v120
    %v122 = vpop.f32.mrf.mxu0
    %v123 = vadd.f32 %v84, %v122
    %124 = vmatmul.bf16.gmra.mxu0 %v103
    %v125 = vpop.f32.mrf.mxu0
    %v126 = vadd.f32 %v84, %v125
    %v127 = vpop.f32.mrf.mxu0
    %v128 = vadd.f32 %v84, %v127
    %129 = vmatmul.bf16.gmra.mxu0 %v106
    %v130 = vpop.f32.mrf.mxu0
    %v131 = vadd.f32 %v84, %v130
    %v132 = vpop.f32.mrf.mxu0
    %v133 = vadd.f32 %v84, %v132
    %134 = vmatmul.bf16.gmra.mxu0 %v109
    %v135 = vpop.f32.mrf.mxu0
    %v136 = vadd.f32 %v84, %v135
    %v137 = vpop.f32.mrf.mxu0
    %v138 = vadd.f32 %v84, %v137
    %139 = vdwg.mxu0
    %v140 = vmax.f32 %v121, 0.0
    %v141 = vmax.f32 %v123, 0.0
    %v142 = vmax.f32 %v126, 0.0
    %v143 = vmax.f32 %v128, 0.0
    %v144 = vmax.f32 %v131, 0.0
    %v145 = vmax.f32 %v133, 0.0
    %v146 = vmax.f32 %v136, 0.0
    %v147 = vmax.f32 %v138, 0.0
    %v148 = vpack.c.bf16 %v141, %v140
    %v149 = vpack.c.bf16 %v143, %v142
    %v150 = vpack.c.bf16 %v145, %v144
    %v151 = vpack.c.bf16 %v147, %v146
    %v152 = vld [vmem:[%s3] sm:$0xf]
    %v153 = vld [vmem:[%s3 + $0x4] sm:$0xf]
    %v154 = vld [vmem:[%s3 + $0x8] sm:$0xf]
    %v155 = vld [vmem:[%s3 + $0xc] sm:$0xf]
    %v156 = vld [vmem:[%s3 + $0x10] sm:$0xf]
    %v157 = vld [vmem:[%s3 + $0x14] sm:$0xf]
    %v158 = vld [vmem:[%s3 + $0x18] sm:$0xf]
    %v159 = vld [vmem:[%s3 + $0x1c] sm:$0xf]
    %v160 = vld [vmem:[%s3 + $0x20] sm:$0xf]
    %v161 = vld [vmem:[%s3 + $0x24] sm:$0xf]
    %v162 = vld [vmem:[%s3 + $0x28] sm:$0xf]
    %v163 = vld [vmem:[%s3 + $0x2c] sm:$0xf]
    %v164 = vld [vmem:[%s3 + $0x30] sm:$0xf]
    %v165 = vld [vmem:[%s3 + $0x34] sm:$0xf]
    %v166 = vld [vmem:[%s3 + $0x38] sm:$0xf]
    %v167 = vld [vmem:[%s3 + $0x3c] sm:$0xf]
    %v168 = vld [vmem:[%s4] sm:$0x1]
    %v170 = vperm.slane %v168, 0
    %v188 = vunpack.c.l.b16 %v152
    %v189 = vunpack.c.l.b16 %v153
    %v190 = vunpack.c.l.b16 %v154
    %v191 = vunpack.c.l.b16 %v155
    %v192 = vunpack.c.l.b16 %v156
    %v193 = vunpack.c.l.b16 %v157
    %v194 = vunpack.c.l.b16 %v158
    %v195 = vunpack.c.l.b16 %v159
    %v196 = vunpack.c.l.b16 %v160
    %v197 = vunpack.c.l.b16 %v161
    %v198 = vunpack.c.l.b16 %v162
    %v199 = vunpack.c.l.b16 %v163
    %v200 = vunpack.c.l.b16 %v164
    %v201 = vunpack.c.l.b16 %v165
    %v202 = vunpack.c.l.b16 %v166
    %v203 = vunpack.c.l.b16 %v167
    %v204 = vpack.c.b16 %v189, %v188
    %v205 = vpack.c.b16 %v191, %v190
    %v206 = vpack.c.b16 %v193, %v192
    %v207 = vpack.c.b16 %v195, %v194
    %v208 = vpack.c.b16 %v197, %v196
    %v209 = vpack.c.b16 %v199, %v198
    %v210 = vpack.c.b16 %v201, %v200
    %v211 = vpack.c.b16 %v203, %v202
    %220 = vmatpush.bf16.msra.mxu0 %v211
    %221 = vmatpush.bf16.msra.mxu0 %v210
    %222 = vmatpush.bf16.msra.mxu0 %v209
    %223 = vmatpush.bf16.msra.mxu0 %v208
    %224 = vmatpush.bf16.msra.mxu0 %v207
    %225 = vmatpush.bf16.msra.mxu0 %v206
    %226 = vmatpush.bf16.msra.mxu0 %v205
    %227 = vmatpush.bf16.msra.mxu0 %v204
    %228 = vmatmul.bf16.gmra.mxu0 %v148
    %v229 = vpop.f32.mrf.mxu0
    %v230 = vadd.f32 %v170, %v229
    %v231 = vpop.f32.mrf.mxu0
    %v232 = vadd.f32 %v170, %v231
    %233 = vmatmul.bf16.gmra.mxu0 %v149
    %v234 = vpop.f32.mrf.mxu0
    %v235 = vadd.f32 %v170, %v234
    %v236 = vpop.f32.mrf.mxu0
    %v237 = vadd.f32 %v170, %v236
    %238 = vmatmul.bf16.gmra.mxu0 %v150
    %v239 = vpop.f32.mrf.mxu0
    %v240 = vadd.f32 %v170, %v239
    %v241 = vpop.f32.mrf.mxu0
    %v242 = vadd.f32 %v170, %v241
    %243 = vmatmul.bf16.gmra.mxu0 %v151
    %v244 = vpop.f32.mrf.mxu0
    %v245 = vadd.f32 %v170, %v244
    %v246 = vpop.f32.mrf.mxu0
    %v247 = vadd.f32 %v170, %v246
    %248 = vdwg.mxu0
    %v249 = vmax.f32 %v230, 0.0
    %v250 = vmax.f32 %v232, 0.0
    %v251 = vmax.f32 %v235, 0.0
    %v252 = vmax.f32 %v237, 0.0
    %v253 = vmax.f32 %v240, 0.0
    %v254 = vmax.f32 %v242, 0.0
    %v255 = vmax.f32 %v245, 0.0
    %v256 = vmax.f32 %v247, 0.0
    %v257 = vpack.c.bf16 %v250, %v249
    %v258 = vpack.c.bf16 %v252, %v251
    %v259 = vpack.c.bf16 %v254, %v253
    %v260 = vpack.c.bf16 %v256, %v255
    %v261 = vld [vmem:[#allocation2] sm:$0xf]
    %v262 = vld [vmem:[#allocation2 + $0x4] sm:$0xf]
    %v263 = vld [vmem:[#allocation2 + $0x8] sm:$0xf]
    %v264 = vld [vmem:[#allocation2 + $0xc] sm:$0xf]
    %v265 = vld [vmem:[#allocation2 + $0x10] sm:$0xf]
    %v266 = vld [vmem:[#allocation2 + $0x14] sm:$0xf]
    %v267 = vld [vmem:[#allocation2 + $0x18] sm:$0xf]
    %v268 = vld [vmem:[#allocation2 + $0x1c] sm:$0xf]
    %v269 = vld [vmem:[#allocation2 + $0x20] sm:$0xf]
    %v270 = vld [vmem:[#allocation2 + $0x24] sm:$0xf]
    %v271 = vld [vmem:[#allocation2 + $0x28] sm:$0xf]
    %v272 = vld [vmem:[#allocation2 + $0x2c] sm:$0xf]
    %v273 = vld [vmem:[#allocation2 + $0x30] sm:$0xf]
    %v274 = vld [vmem:[#allocation2 + $0x34] sm:$0xf]
    %v275 = vld [vmem:[#allocation2 + $0x38] sm:$0xf]
    %v276 = vld [vmem:[#allocation2 + $0x3c] sm:$0xf]
    %v277 = vld [vmem:[%s6] sm:$0x1]
    %v279 = vperm.slane %v277, 0
    %v297 = vunpack.c.l.b16 %v261
    %v298 = vunpack.c.l.b16 %v262
    %v299 = vunpack.c.l.b16 %v263
    %v300 = vunpack.c.l.b16 %v264
    %v301 = vunpack.c.l.b16 %v265
    %v302 = vunpack.c.l.b16 %v266
    %v303 = vunpack.c.l.b16 %v267
    %v304 = vunpack.c.l.b16 %v268
    %v305 = vunpack.c.l.b16 %v269
    %v306 = vunpack.c.l.b16 %v270
    %v307 = vunpack.c.l.b16 %v271
    %v308 = vunpack.c.l.b16 %v272
    %v309 = vunpack.c.l.b16 %v273
    %v310 = vunpack.c.l.b16 %v274
    %v311 = vunpack.c.l.b16 %v275
    %v312 = vunpack.c.l.b16 %v276
    %v313 = vpack.c.b16 %v298, %v297
    %v314 = vpack.c.b16 %v300, %v299
    %v315 = vpack.c.b16 %v302, %v301
    %v316 = vpack.c.b16 %v304, %v303
    %v317 = vpack.c.b16 %v306, %v305
    %v318 = vpack.c.b16 %v308, %v307
    %v319 = vpack.c.b16 %v310, %v309
    %v320 = vpack.c.b16 %v312, %v311
    %329 = vmatpush.bf16.msra.mxu0 %v320
    %330 = vmatpush.bf16.msra.mxu0 %v319
    %331 = vmatpush.bf16.msra.mxu0 %v318
    %332 = vmatpush.bf16.msra.mxu0 %v317
    %333 = vmatpush.bf16.msra.mxu0 %v316
    %334 = vmatpush.bf16.msra.mxu0 %v315
    %335 = vmatpush.bf16.msra.mxu0 %v314
    %336 = vmatpush.bf16.msra.mxu0 %v313
    %337 = vmatmul.bf16.gmra.mxu0 %v257
    %v338 = vpop.f32.mrf.mxu0
    %v339 = vadd.f32 %v279, %v338
    %v340 = vpop.f32.mrf.mxu0
    %v341 = vadd.f32 %v279, %v340
    %342 = vmatmul.bf16.gmra.mxu0 %v258
    %v343 = vpop.f32.mrf.mxu0
    %v344 = vadd.f32 %v279, %v343
    %v345 = vpop.f32.mrf.mxu0
    %v346 = vadd.f32 %v279, %v345
    %347 = vmatmul.bf16.gmra.mxu0 %v259
    %v348 = vpop.f32.mrf.mxu0
    %v349 = vadd.f32 %v279, %v348
    %v350 = vpop.f32.mrf.mxu0
    %v351 = vadd.f32 %v279, %v350
    %352 = vmatmul.bf16.gmra.mxu0 %v260
    %v353 = vpop.f32.mrf.mxu0
    %v354 = vadd.f32 %v279, %v353
    %v355 = vpop.f32.mrf.mxu0
    %v356 = vadd.f32 %v279, %v355
    %357 = vdwg.mxu0
    %v358 = vmax.f32 %v339, 0.0
    %v359 = vmax.f32 %v341, 0.0
    %v360 = vmax.f32 %v344, 0.0
    %v361 = vmax.f32 %v346, 0.0
    %v362 = vmax.f32 %v349, 0.0
    %v363 = vmax.f32 %v351, 0.0
    %v364 = vmax.f32 %v354, 0.0
    %v365 = vmax.f32 %v356, 0.0
    %v366 = vpack.c.bf16 %v359, %v358
    %v367 = vpack.c.bf16 %v361, %v360
    %v368 = vpack.c.bf16 %v363, %v362
    %v369 = vpack.c.bf16 %v365, %v364
    %v370 = vld [vmem:[#allocation5] sm:$0xff]
    %v371 = vld [vmem:[#allocation5 + $0x8] sm:$0xff]
    %v372 = vld [vmem:[#allocation5 + $0x10] sm:$0xff]
    %v373 = vld [vmem:[#allocation5 + $0x18] sm:$0xff]
    %v374 = vld [vmem:[#allocation5 + $0x20] sm:$0xff]
    %v375 = vld [vmem:[#allocation5 + $0x28] sm:$0xff]
    %v376 = vld [vmem:[#allocation5 + $0x30] sm:$0xff]
    %v377 = vld [vmem:[#allocation5 + $0x38] sm:$0xff]
    %v378 = vld [vmem:[#allocation5 + $0x40] sm:$0xff]
    %v379 = vld [vmem:[#allocation5 + $0x48] sm:$0xff]
    %v380 = vld [vmem:[#allocation5 + $0x50] sm:$0xff]
    %v381 = vld [vmem:[#allocation5 + $0x58] sm:$0xff]
    %v382 = vld [vmem:[#allocation5 + $0x60] sm:$0xff]
    %v383 = vld [vmem:[#allocation5 + $0x68] sm:$0xff]
    %v384 = vld [vmem:[#allocation5 + $0x70] sm:$0xff]
    %v385 = vld [vmem:[#allocation5 + $0x78] sm:$0xff]
    %v386 = vld [vmem:[%s8] sm:$0x3]
    %v388 = vperm.slane %v386, 0
    %v389 = vperm.slane %v386, 1
    %v408 = vunpack.c.l.b16 %v370
    %v409 = vunpack.c.h.b16 %v370
    %v410 = vunpack.c.l.b16 %v371
    %v411 = vunpack.c.h.b16 %v371
    %v412 = vunpack.c.l.b16 %v372
    %v413 = vunpack.c.h.b16 %v372
    %v414 = vunpack.c.l.b16 %v373
    %v415 = vunpack.c.h.b16 %v373
    %v416 = vunpack.c.l.b16 %v374
    %v417 = vunpack.c.h.b16 %v374
    %v418 = vunpack.c.l.b16 %v375
    %v419 = vunpack.c.h.b16 %v375
    %v420 = vunpack.c.l.b16 %v376
    %v421 = vunpack.c.h.b16 %v376
    %v422 = vunpack.c.l.b16 %v377
    %v423 = vunpack.c.h.b16 %v377
    %v424 = vunpack.c.l.b16 %v378
    %v425 = vunpack.c.h.b16 %v378
    %v426 = vunpack.c.l.b16 %v379
    %v427 = vunpack.c.h.b16 %v379
    %v428 = vunpack.c.l.b16 %v380
    %v429 = vunpack.c.h.b16 %v380
    %v430 = vunpack.c.l.b16 %v381
    %v431 = vunpack.c.h.b16 %v381
    %v432 = vunpack.c.l.b16 %v382
    %v433 = vunpack.c.h.b16 %v382
    %v434 = vunpack.c.l.b16 %v383
    %v435 = vunpack.c.h.b16 %v383
    %v436 = vunpack.c.l.b16 %v384
    %v437 = vunpack.c.h.b16 %v384
    %v438 = vunpack.c.l.b16 %v385
    %v439 = vunpack.c.h.b16 %v385
    %v440 = vpack.c.b16 %v410, %v408
    %v441 = vpack.c.b16 %v411, %v409
    %v442 = vpack.c.b16 %v414, %v412
    %v443 = vpack.c.b16 %v415, %v413
    %v444 = vpack.c.b16 %v418, %v416
    %v445 = vpack.c.b16 %v419, %v417
    %v446 = vpack.c.b16 %v422, %v420
    %v447 = vpack.c.b16 %v423, %v421
    %v448 = vpack.c.b16 %v426, %v424
    %v449 = vpack.c.b16 %v427, %v425
    %v450 = vpack.c.b16 %v430, %v428
    %v451 = vpack.c.b16 %v431, %v429
    %v452 = vpack.c.b16 %v434, %v432
    %v453 = vpack.c.b16 %v435, %v433
    %v454 = vpack.c.b16 %v438, %v436
    %v455 = vpack.c.b16 %v439, %v437
    %472 = vmatpush.bf16.msra.mxu0 %v454
    %473 = vmatpush.bf16.msra.mxu0 %v452
    %474 = vmatpush.bf16.msra.mxu0 %v450
    %475 = vmatpush.bf16.msra.mxu0 %v448
    %476 = vmatpush.bf16.msra.mxu0 %v446
    %477 = vmatpush.bf16.msra.mxu0 %v444
    %478 = vmatpush.bf16.msra.mxu0 %v442
    %479 = vmatpush.bf16.msra.mxu0 %v440
    %480 = vmatmul.bf16.gmra.mxu0 %v366
    %v481 = vpop.f32.mrf.mxu0
    %v482 = vadd.f32 %v388, %v481
    %v483 = vpop.f32.mrf.mxu0
    %v484 = vadd.f32 %v388, %v483
    %485 = vmatmul.bf16.gmra.mxu0 %v367
    %v486 = vpop.f32.mrf.mxu0
    %v487 = vadd.f32 %v388, %v486
    %v488 = vpop.f32.mrf.mxu0
    %v489 = vadd.f32 %v388, %v488
    %490 = vmatmul.bf16.gmra.mxu0 %v368
    %v491 = vpop.f32.mrf.mxu0
    %v492 = vadd.f32 %v388, %v491
    %v493 = vpop.f32.mrf.mxu0
    %v494 = vadd.f32 %v388, %v493
    %495 = vmatmul.bf16.gmra.mxu0 %v369
    %v496 = vpop.f32.mrf.mxu0
    %v497 = vadd.f32 %v388, %v496
    %v498 = vpop.f32.mrf.mxu0
    %v499 = vadd.f32 %v388, %v498
    %500 = vdwg.mxu0
    %501 = vmatpush.bf16.msra.mxu0 %v455
    %502 = vmatpush.bf16.msra.mxu0 %v453
    %503 = vmatpush.bf16.msra.mxu0 %v451
    %504 = vmatpush.bf16.msra.mxu0 %v449
    %505 = vmatpush.bf16.msra.mxu0 %v447
    %506 = vmatpush.bf16.msra.mxu0 %v445
    %507 = vmatpush.bf16.msra.mxu0 %v443
    %508 = vmatpush.bf16.msra.mxu0 %v441
    %509 = vmatmul.bf16.gmra.mxu0 %v366
    %v510 = vpop.f32.mrf.mxu0
    %v511 = vadd.f32 %v389, %v510
    %v512 = vpop.f32.mrf.mxu0
    %v513 = vadd.f32 %v389, %v512
    %514 = vmatmul.bf16.gmra.mxu0 %v367
    %v515 = vpop.f32.mrf.mxu0
    %v516 = vadd.f32 %v389, %v515
    %v517 = vpop.f32.mrf.mxu0
    %v518 = vadd.f32 %v389, %v517
    %519 = vmatmul.bf16.gmra.mxu0 %v368
    %v520 = vpop.f32.mrf.mxu0
    %v521 = vadd.f32 %v389, %v520
    %v522 = vpop.f32.mrf.mxu0
    %v523 = vadd.f32 %v389, %v522
    %524 = vmatmul.bf16.gmra.mxu0 %v369
    %v525 = vpop.f32.mrf.mxu0
    %v526 = vadd.f32 %v389, %v525
    %v527 = vpop.f32.mrf.mxu0
    %v528 = vadd.f32 %v389, %v527
    %529 = vdwg.mxu0
    %530 = vst [vmem:[#allocation7] sm:$0xff] %v482
    %531 = vst [vmem:[#allocation7 + $0x8] sm:$0xff] %v511
    %532 = vst [vmem:[#allocation7 + $0x10] sm:$0xff] %v484
    %533 = vst [vmem:[#allocation7 + $0x18] sm:$0xff] %v513
    %534 = vst [vmem:[#allocation7 + $0x20] sm:$0xff] %v487
    %535 = vst [vmem:[#allocation7 + $0x28] sm:$0xff] %v516
    %536 = vst [vmem:[#allocation7 + $0x30] sm:$0xff] %v489
    %537 = vst [vmem:[#allocation7 + $0x38] sm:$0xff] %v518
    %538 = vst [vmem:[#allocation7 + $0x40] sm:$0xff] %v492
    %539 = vst [vmem:[#allocation7 + $0x48] sm:$0xff] %v521
    %540 = vst [vmem:[#allocation7 + $0x50] sm:$0xff] %v494
    %541 = vst [vmem:[#allocation7 + $0x58] sm:$0xff] %v523
    %542 = vst [vmem:[#allocation7 + $0x60] sm:$0xff] %v497
    %543 = vst [vmem:[#allocation7 + $0x68] sm:$0xff] %v526
    %544 = vst [vmem:[#allocation7 + $0x70] sm:$0xff] %v499
    %545 = vst [vmem:[#allocation7 + $0x78] sm:$0xff] %v528
    // Predicated region
    $region46: #{tpu_custom_call.1} parent=1 // pred_check
      _
    $region47: #{tpu_custom_call.1} parent=1 // pred_check_branch
      %547 = sbr.rel (0) target = $region49
    $region48: #{tpu_custom_call.1} parent=1 // pred_region
      %549 = vsyncadd [#allocation4], 0
      %s550 = sshll.u32 [#allocation7], 4
      %s551 = int_to_ptr.vmem [resolvable:$true] %s550
      %s552 = sshll.u32 %s9, 4
      %s553 = int_to_ptr.hbm [resolvable:$true] %s552
      %558 = dma.vmem_to_hbm [thread:$0]  %s551, 2048, %s553, [#allocation4], 256, 256, 16
    $region49: #{tpu_custom_call.1} parent=1 // pred_fallthru
      _
    // Predicated region
    $region50: #{tpu_custom_call.1} parent=1 // pred_check
      _
    $region51: #{tpu_custom_call.1} parent=1 // pred_check_branch
      %560 = sbr.rel (0) target = $region53
    $region52: #{tpu_custom_call.1} parent=1 // pred_region
      %562 = dma.done [#allocation4], 2048
    $region53: #{tpu_custom_call.1} parent=1 // pred_fallthru
      _
    %563 = vsyncpa [#allocation3], 1
    %564 = vsyncpa [#allocation6], 1
    %565 = vsyncpa [#allocation4], 1

</llo_original>
